<compile_context>
chip_gen: v7x
topology: tpu7x:2x2x1
jax: 0.10.0
libtpu: 0.0.40
codegen_flags: <defaults>
</compile_context>

<pallas_src>
import jax
import jax.numpy as jnp
from jax.experimental import pallas as pl
from jax.experimental.pallas import tpu as pltpu

# (name, feature_index, mu, sigma) — deterministic parameter init straight
# from FuzzyMembershipLayer.__init__.
MF_ORDER = [
    ("qrs.narrow",      0,   80.0,  15.0),
    ("qrs.normal",      0,  100.0,  15.0),
    ("qrs.wide",        0,  130.0,  20.0),
    ("rr_prev.short",   1,  600.0, 100.0),
    ("rr_prev.normal",  1,  800.0, 100.0),
    ("rr_prev.long",    1, 1000.0, 150.0),
    ("rr_post.short",   2,  600.0, 100.0),
    ("rr_post.normal",  2,  800.0, 100.0),
    ("rr_post.long",    2, 1000.0, 150.0),
    ("p_absent.false",  3,    0.0,   0.1),
    ("p_absent.true",   3,    1.0,   0.1),
    ("t_inv.false",     4,    0.0,   0.1),
    ("t_inv.true",      4,    1.0,   0.1),
    ("pr_int.short",    5,  120.0,  20.0),
    ("pr_int.normal",   5,  160.0,  20.0),
    ("pr_int.long",     5,  200.0,  30.0),
]

NUM_FEATURES = 6
NUM_MF = len(MF_ORDER)                       # 16
FEAT_IDX = tuple(f for (_, f, _, _) in MF_ORDER)   # compile-time constants

MAX_TB = 16384   # lane-block upper bound (f32: ~0.4 MiB in + 1 MiB out per buffer)


def _round_up(n: int, m: int) -> int:
    return ((n + m - 1) // m) * m


def _fuzzy_kernel(x_ref, mu_ref, a_ref, out_ref):
    # x_ref:   (6,  TB) f32   — batch on the lane axis
    # mu_ref:  (16, 1)  f32   — per-MF center      (grid-invariant)
    # a_ref:   (16, 1)  f32   — per-MF -0.5/sigma^2 (grid-invariant)
    # out_ref: (16, TB) f32
    x = x_ref[...]
    # Static feature gather: row j of xs is x[FEAT_IDX[j], :].  Pure sublane
    # layout work built from static slices (no MXU, no dynamic gather).
    xs = jnp.concatenate([x[f:f + 1, :] for f in FEAT_IDX], axis=0)   # (16, TB)
    d = xs - mu_ref[...]                      # lane-broadcast of (16,1)
    out_ref[...] = jnp.exp(a_ref[...] * d * d)


def fuzzy_membership_pallas(x: jax.Array) -> dict:
    """x: (batch, 6) float32 -> dict-of-dicts of (batch,) membership values."""
    assert x.ndim == 2 and x.shape[1] == NUM_FEATURES
    batch = x.shape[0]
    x = x.astype(jnp.float32)

    # Parameters (kept as kernel inputs so they could be learnable).
    mu = jnp.array([[m] for (_, _, m, _) in MF_ORDER], dtype=jnp.float32)       # (16, 1)
    sigma = jnp.array([[s] for (_, _, _, s) in MF_ORDER], dtype=jnp.float32)    # (16, 1)
    a = -0.5 / (sigma * sigma)                                                  # (16, 1)

    # Transpose so batch is the lane axis; pad batch to a multiple of the tile.
    padded = _round_up(max(batch, 1), 128)
    if padded <= MAX_TB:
        tb = padded
    else:
        tb = MAX_TB
        padded = _round_up(batch, tb)
    xt = jnp.zeros((NUM_FEATURES, padded), jnp.float32).at[:, :batch].set(x.T)  # (6, padded)

    grid = (padded // tb,)
    out = pl.pallas_call(
        _fuzzy_kernel,
        out_shape=jax.ShapeDtypeStruct((NUM_MF, padded), jnp.float32),
        grid_spec=pltpu.PrefetchScalarGridSpec(
            num_scalar_prefetch=0,
            grid=grid,
            in_specs=[
                pl.BlockSpec((NUM_FEATURES, tb), lambda i: (0, i)),
                pl.BlockSpec((NUM_MF, 1), lambda i: (0, 0)),
                pl.BlockSpec((NUM_MF, 1), lambda i: (0, 0)),
            ],
            out_specs=pl.BlockSpec((NUM_MF, tb), lambda i: (0, i)),
        ),
        compiler_params=pltpu.CompilerParams(
            dimension_semantics=("parallel",),
        ),
    )(xt, mu, a)                                                                # (16, padded)

    # Re-assemble the nested-dict structure of the PyTorch forward.
    # Rows of the (16, padded) slab are contiguous slices.
    result = {}
    for j, (name, _, _, _) in enumerate(MF_ORDER):
        group, member = name.split(".")
        result.setdefault(group, {})[member] = out[j, :batch]
    return result


def fuzzy_membership_ref(x: jax.Array) -> dict:
    """Pure-JAX reference mirroring the PyTorch module exactly."""
    x = x.astype(jnp.float32)
    result = {}
    for (name, f, mu, sigma) in MF_ORDER:
        group, member = name.split(".")
        v = jnp.exp(-0.5 * ((x[:, f] - mu) / sigma) ** 2)
        result.setdefault(group, {})[member] = v
    return result


if __name__ == "__main__":
    key = jax.random.PRNGKey(0)
    batch = 8
    k0, k1, k2, k3, k4, k5 = jax.random.split(key, 6)
    # Plausible (batch, 6) feature tensor: [qrs_dur, rr_prev, rr_post,
    # p_absent, t_inv, pr_int]
    x = jnp.stack(
        [
            jax.random.uniform(k0, (batch,), minval=60.0, maxval=160.0),
            jax.random.uniform(k1, (batch,), minval=400.0, maxval=1200.0),
            jax.random.uniform(k2, (batch,), minval=400.0, maxval=1200.0),
            jax.random.uniform(k3, (batch,), minval=0.0, maxval=1.0),
            jax.random.uniform(k4, (batch,), minval=0.0, maxval=1.0),
            jax.random.uniform(k5, (batch,), minval=80.0, maxval=260.0),
        ],
        axis=1,
    ).astype(jnp.float32)

    out = fuzzy_membership_pallas(x)
    out = jax.block_until_ready(out)
    ref = fuzzy_membership_ref(x)

    for group in ref:
        for member in ref[group]:
            a = out[group][member]
            b = ref[group][member]
            assert a.shape == (batch,), (group, member, a.shape)
            assert jnp.allclose(a, b, rtol=1e-5, atol=1e-6), (group, member)

    print("KERNEL_OK")
</pallas_src>

<mosaic_0001>
module attributes {stable_mosaic.version = 11 : i64} {
  func.func @_fuzzy_kernel(%arg0: i32, %arg1: memref<6x128xf32, #tpu.memory_space<vmem>>, %arg2: memref<16x1xf32, #tpu.memory_space<vmem>>, %arg3: memref<16x1xf32, #tpu.memory_space<vmem>>, %arg4: memref<16x128xf32, #tpu.memory_space<vmem>>) attributes {dimension_semantics = [#tpu.dimension_semantics<parallel>], iteration_bounds = array<i64: 1>, scalar_prefetch = 0 : i64, scratch_operands = 0 : i64, tpu.core_type = #tpu.core_type<tc>, window_params = [{transform_indices = @transform_0, window_bounds = array<i64: 6, 128>}, {pipeline_mode = #tpu.pipeline_mode<synchronous>, transform_indices = @transform_1, window_bounds = array<i64: 16, 1>}, {pipeline_mode = #tpu.pipeline_mode<synchronous>, transform_indices = @transform_2, window_bounds = array<i64: 16, 1>}, {transform_indices = @transform_3, window_bounds = array<i64: 16, 128>}]} {
    %c0 = arith.constant 0 : index
    %c0_0 = arith.constant 0 : index
    %0 = vector.load %arg1[%c0, %c0_0] : memref<6x128xf32, #tpu.memory_space<vmem>>, vector<6x128xf32>
    %1 = vector.extract_strided_slice %0 {offsets = [0, 0], sizes = [1, 128], strides = [1, 1]} : vector<6x128xf32> to vector<1x128xf32>
    %2 = vector.extract_strided_slice %0 {offsets = [0, 0], sizes = [1, 128], strides = [1, 1]} : vector<6x128xf32> to vector<1x128xf32>
    %3 = vector.extract_strided_slice %0 {offsets = [0, 0], sizes = [1, 128], strides = [1, 1]} : vector<6x128xf32> to vector<1x128xf32>
    %4 = vector.extract_strided_slice %0 {offsets = [1, 0], sizes = [1, 128], strides = [1, 1]} : vector<6x128xf32> to vector<1x128xf32>
    %5 = vector.extract_strided_slice %0 {offsets = [1, 0], sizes = [1, 128], strides = [1, 1]} : vector<6x128xf32> to vector<1x128xf32>
    %6 = vector.extract_strided_slice %0 {offsets = [1, 0], sizes = [1, 128], strides = [1, 1]} : vector<6x128xf32> to vector<1x128xf32>
    %7 = vector.extract_strided_slice %0 {offsets = [2, 0], sizes = [1, 128], strides = [1, 1]} : vector<6x128xf32> to vector<1x128xf32>
    %8 = vector.extract_strided_slice %0 {offsets = [2, 0], sizes = [1, 128], strides = [1, 1]} : vector<6x128xf32> to vector<1x128xf32>
    %9 = vector.extract_strided_slice %0 {offsets = [2, 0], sizes = [1, 128], strides = [1, 1]} : vector<6x128xf32> to vector<1x128xf32>
    %10 = vector.extract_strided_slice %0 {offsets = [3, 0], sizes = [1, 128], strides = [1, 1]} : vector<6x128xf32> to vector<1x128xf32>
    %11 = vector.extract_strided_slice %0 {offsets = [3, 0], sizes = [1, 128], strides = [1, 1]} : vector<6x128xf32> to vector<1x128xf32>
    %12 = vector.extract_strided_slice %0 {offsets = [4, 0], sizes = [1, 128], strides = [1, 1]} : vector<6x128xf32> to vector<1x128xf32>
    %13 = vector.extract_strided_slice %0 {offsets = [4, 0], sizes = [1, 128], strides = [1, 1]} : vector<6x128xf32> to vector<1x128xf32>
    %14 = vector.extract_strided_slice %0 {offsets = [5, 0], sizes = [1, 128], strides = [1, 1]} : vector<6x128xf32> to vector<1x128xf32>
    %15 = vector.extract_strided_slice %0 {offsets = [5, 0], sizes = [1, 128], strides = [1, 1]} : vector<6x128xf32> to vector<1x128xf32>
    %16 = vector.extract_strided_slice %0 {offsets = [5, 0], sizes = [1, 128], strides = [1, 1]} : vector<6x128xf32> to vector<1x128xf32>
    %17 = tpu.concatenate %1, %2, %3, %4, %5, %6, %7, %8, %9, %10, %11, %12, %13, %14, %15, %16 in 0 : vector<1x128xf32>, vector<1x128xf32>, vector<1x128xf32>, vector<1x128xf32>, vector<1x128xf32>, vector<1x128xf32>, vector<1x128xf32>, vector<1x128xf32>, vector<1x128xf32>, vector<1x128xf32>, vector<1x128xf32>, vector<1x128xf32>, vector<1x128xf32>, vector<1x128xf32>, vector<1x128xf32>, vector<1x128xf32> -> vector<16x128xf32>
    %c0_1 = arith.constant 0 : index
    %c0_2 = arith.constant 0 : index
    %18 = vector.load %arg2[%c0_1, %c0_2] : memref<16x1xf32, #tpu.memory_space<vmem>>, vector<16x1xf32>
    %19 = vector.broadcast %18 : vector<16x1xf32> to vector<16x128xf32>
    %20 = arith.subf %17, %19 : vector<16x128xf32>
    %c0_3 = arith.constant 0 : index
    %c0_4 = arith.constant 0 : index
    %21 = vector.load %arg3[%c0_3, %c0_4] : memref<16x1xf32, #tpu.memory_space<vmem>>, vector<16x1xf32>
    %22 = vector.broadcast %21 : vector<16x1xf32> to vector<16x128xf32>
    %23 = arith.mulf %22, %20 : vector<16x128xf32>
    %24 = arith.mulf %23, %20 : vector<16x128xf32>
    %25 = math.exp %24 : vector<16x128xf32>
    %c0_5 = arith.constant 0 : index
    %c0_6 = arith.constant 0 : index
    %26 = vector.load %arg4[%c0_5, %c0_6] : memref<16x128xf32, #tpu.memory_space<vmem>>, vector<16x128xf32>
    tpu.vector_store %arg4[%c0_5, %c0_6], %25 {strides = array<i32>} : memref<16x128xf32, #tpu.memory_space<vmem>>, vector<16x128xf32>,
    return
  }
  func.func @transform_0(%arg0: i32) -> (i32, i32) {
    %c0_i32 = arith.constant 0 : i32
    %c0_i32_0 = arith.constant 0 : i32
    return %c0_i32, %arg0 : i32, i32
  }
  func.func @transform_1(%arg0: i32) -> (i32, i32) {
    %c0_i32 = arith.constant 0 : i32
    %c0_i32_0 = arith.constant 0 : i32
    %c0_i32_1 = arith.constant 0 : i32
    return %c0_i32, %c0_i32_0 : i32, i32
  }
  func.func @transform_2(%arg0: i32) -> (i32, i32) {
    %c0_i32 = arith.constant 0 : i32
    %c0_i32_0 = arith.constant 0 : i32
    %c0_i32_1 = arith.constant 0 : i32
    return %c0_i32, %c0_i32_0 : i32, i32
  }
  func.func @transform_3(%arg0: i32) -> (i32, i32) {
    %c0_i32 = arith.constant 0 : i32
    %c0_i32_0 = arith.constant 0 : i32
    return %c0_i32, %arg0 : i32, i32
  }
}

</mosaic_0001>

<llo_original>
// kernel: tpu_custom_call.1
$region0: #{tpu_custom_call.1}
  #allocation0 [shape = 'u32[]', space=smem, size = 0x4, offset = 0x4, fixed_abs, tag = 'smem constant byte address 0x4 - core index']
  #allocation1 [shape = 'u32[144,128]{1,0:T(1,128)}', space=vmem, size = 0x12000, scoped, tag = 'internal scratch']
  %s0 = inlined_call_operand.vmem [shape: f32[6,128], index: 0, kind: input, shape index: {}]
  %s1 = inlined_call_operand.vmem [shape: f32[16,1], index: 1, kind: input, shape index: {}]
  %s2 = inlined_call_operand.vmem [shape: f32[16,1], index: 2, kind: input, shape index: {}]
  %s3 = inlined_call_operand.hbm [shape: f32[16,128], index: 3, kind: output, shape index: {}]
  %s4 = sld [smem:[#allocation0]]
  $region22: #{tpu_custom_call.1} parent=0
    _
  %s6 = ssub.s32 1, %s4
  %s7 = scalar_select 0, %s6, %s4
  $region1: #{tpu_custom_call.1} parent=0
    #allocation2 [shape = 'u8[8192]{0}', space=vmem, size = 0x2000, scoped, tag = 'output window, operand 0, single buffered']
    #allocation3 [shape = 's32[1]{0}', space=sflag, size = 0x4, scoped, tag = 'scoped memory for tpu_custom_call.1']
    %8 = vsyncpa [#allocation3], 0
    // Predicated region
    $region2: #{tpu_custom_call.1} parent=1 // pred_check
      _
    $region3: #{tpu_custom_call.1} parent=1 // pred_check_branch
      %10 = sbr.rel (0) target = $region5
    $region4: #{tpu_custom_call.1} parent=1 // pred_region
      _
    $region5: #{tpu_custom_call.1} parent=1 // pred_fallthru
      _
    // Predicated region
    $region6: #{tpu_custom_call.1} parent=1 // pred_check
      _
    $region7: #{tpu_custom_call.1} parent=1 // pred_check_branch
      %12 = sbr.rel (0) target = $region9
    $region8: #{tpu_custom_call.1} parent=1 // pred_region
      _
    $region9: #{tpu_custom_call.1} parent=1 // pred_fallthru
      _
    // Predicated region
    $region10: #{tpu_custom_call.1} parent=1 // pred_check
      _
    $region11: #{tpu_custom_call.1} parent=1 // pred_check_branch
      %14 = sbr.rel (0) target = $region13
    $region12: #{tpu_custom_call.1} parent=1 // pred_region
      _
    $region13: #{tpu_custom_call.1} parent=1 // pred_fallthru
      _
    %v15 = vld [vmem:[%s0] sm:$0x3f]
    %v17 = vrot.slane %v15, 7
    %v19 = vrot.slane %v15, 6
    %v21 = vrot.slane %v15, 5
    %v23 = vrot.slane %v15, 4
    %v25 = vrot.slane %v15, 3
    %v27 = vrot.slane %v15, 2
    %v29 = vrot.slane %v15, 1
    %vm31 = vcmask 1040384
    %v32 = vsel %vm31, %v15, %v17
    %vm33 = vcmask 1041408
    %v34 = vsel %vm33, %v32, %v19
    %vm35 = vcmask 1042432
    %v36 = vsel %vm35, %v34, %v19
    %vm37 = vcmask 1043456
    %v38 = vsel %vm37, %v36, %v21
    %vm39 = vcmask 1044480
    %v40 = vsel %vm39, %v38, %v23
    %vm41 = vcmask 1045504
    %v42 = vsel %vm41, %v40, %v23
    %vm43 = vcmask 1046528
    %v44 = vsel %vm43, %v42, %v25
    %v45 = vsel %vm33, %v27, %v29
    %v46 = vsel %vm35, %v45, %v29
    %v47 = vsel %vm37, %v46, %v15
    %v48 = vsel %vm39, %v47, %v15
    %v49 = vsel %vm41, %v48, %v17
    %v50 = vsel %vm43, %v49, %v19
    %v51 = vld [vmem:[%s1] sm:$0xff]
    %v52 = vld [vmem:[%s1 + $0x8] sm:$0xff]
    %54 = vset.pattern.permute.xlu0 0
    %55 = vperm.xlu0 %54, %v51
    %v56 = vpop.permute.xlu0 %55
    %59 = vset.pattern.permute.xlu0 0
    %60 = vperm.xlu0 %59, %v52
    %v61 = vpop.permute.xlu0 %60
    %v63 = vsub.f32 %v44, %v56
    %v64 = vsub.f32 %v50, %v61
    %v65 = vld [vmem:[%s2] sm:$0xff]
    %v66 = vld [vmem:[%s2 + $0x8] sm:$0xff]
    %68 = vset.pattern.permute.xlu0 0
    %69 = vperm.xlu0 %68, %v65
    %v70 = vpop.permute.xlu0 %69
    %73 = vset.pattern.permute.xlu0 0
    %74 = vperm.xlu0 %73, %v66
    %v75 = vpop.permute.xlu0 %74
    %v77 = vmul.f32 %v70, %v63
    %v78 = vmul.f32 %v75, %v64
    %v79 = vmul.f32 %v77, %v63
    %v80 = vmul.f32 %v78, %v64
    %v81 = vmul.f32 %v79, 1.442695
    %v82 = vpow.pop %v81
    %v83 = vmul.f32 %v80, 1.442695
    %v84 = vpow.pop %v83
    %85 = vst [vmem:[#allocation2] sm:$0xff] %v82
    %86 = vst [vmem:[#allocation2 + $0x8] sm:$0xff] %v84
    // Predicated region
    $region14: #{tpu_custom_call.1} parent=1 // pred_check
      _
    $region15: #{tpu_custom_call.1} parent=1 // pred_check_branch
      %88 = sbr.rel (0) target = $region17
    $region16: #{tpu_custom_call.1} parent=1 // pred_region
      %s90 = ssub.s32 256, 256
      %91 = vsyncadd [#allocation3], %s90
      %s92 = sshll.u32 [#allocation2], 4
      %s93 = int_to_ptr.vmem [resolvable:$true] %s92
      %98 = dma.vmem_to_hbm [thread:$0]  %s93, 256, %s3, [#allocation3], 128, 128, 8
    $region17: #{tpu_custom_call.1} parent=1 // pred_fallthru
      _
    // Predicated region
    $region18: #{tpu_custom_call.1} parent=1 // pred_check
      _
    $region19: #{tpu_custom_call.1} parent=1 // pred_check_branch
      %100 = sbr.rel (0) target = $region21
    $region20: #{tpu_custom_call.1} parent=1 // pred_region
      %101 = dma.done [#allocation3], 256
    $region21: #{tpu_custom_call.1} parent=1 // pred_fallthru
      _
    %102 = vsyncpa [#allocation3], 1

</llo_original>
